<compile_context>
chip_gen: v7x
topology: tpu7x:2x2x1
jax: 0.10.0
libtpu: 0.0.40
codegen_flags: <defaults>
</compile_context>

<pallas_src>
import functools

import jax
import jax.numpy as jnp
from jax.experimental import pallas as pl
from jax.experimental.pallas import tpu as pltpu

B_COEF = 0.1
R_COEF = 0.2
B_POW = 2   # x ** b  (b = 2)
A_POW = 1   # x ** a  (a = 1) -> x**a == x; R is folded into A in the wrapper

# If f32 x exceeds this, fall back to streaming x per-k instead of keeping it
# VMEM-resident (keeps the kernel usable for very large N*D).
_X_RESIDENT_MAX_BYTES = 16 * 1024 * 1024
_VMEM_LIMIT_BYTES = 48 * 1024 * 1024


def _bd_kernel_resident(ra_ref, x_ref, o_ref, acc_ref, *, tm, tk):
    """Grid step (i, k) with x fully VMEM-resident.

    ra_ref  : (tm, tk)  tile of A' = R*A          (operand dtype, e.g. bf16)
    x_ref   : (N, Dp)   full x, resident in VMEM  (f32)
    o_ref   : (tm, Dp)  output tile
    acc_ref : (tm, Dp)  f32 accumulator scratch (resident across the k axis)
    """
    i = pl.program_id(0)
    k = pl.program_id(1)

    koff = pl.multiple_of(k * tk, tk)
    # Contraction block of x (x**a, a == 1), cast to the MXU operand dtype.
    xk = x_ref[pl.ds(koff, tk), :].astype(ra_ref.dtype)
    contrib = jnp.dot(ra_ref[...], xk, preferred_element_type=jnp.float32)

    @pl.when(k == 0)
    def _init():
        acc_ref[...] = contrib          # first partial product, no zero-init

    @pl.when(k != 0)
    def _accum():
        acc_ref[...] += contrib

    @pl.when(k == pl.num_programs(1) - 1)
    def _store():
        roff = pl.multiple_of(i * tm, tm)
        xr = x_ref[pl.ds(roff, tm), :]  # f32 rows of x for the elementwise term
        o_ref[...] = (acc_ref[...] - B_COEF * xr ** B_POW).astype(o_ref.dtype)


def _bd_kernel_streamed(ra_ref, xk_ref, xrow_ref, o_ref, acc_ref):
    """Fallback grid step (i, k) with x streamed per block (x too big for VMEM).

    ra_ref   : (tm, tk)  tile of A' = R*A (operand dtype)
    xk_ref   : (tk, Dp)  contraction block of x (f32)
    xrow_ref : (tm, Dp)  x rows matching this output tile (f32)
    """
    k = pl.program_id(1)

    contrib = jnp.dot(
        ra_ref[...], xk_ref[...].astype(ra_ref.dtype),
        preferred_element_type=jnp.float32,
    )

    @pl.when(k == 0)
    def _init():
        acc_ref[...] = contrib

    @pl.when(k != 0)
    def _accum():
        acc_ref[...] += contrib

    @pl.when(k == pl.num_programs(1) - 1)
    def _store():
        o_ref[...] = (
            acc_ref[...] - B_COEF * xrow_ref[...] ** B_POW
        ).astype(o_ref.dtype)


def _sublane_multiple(dtype):
    # Packed sublane tile: f32 -> 8, bf16 -> 16, 1-byte dtypes -> 32.
    return {4: 8, 2: 16, 1: 32}[jnp.dtype(dtype).itemsize]


def _largest_tile(n, cap, multiple):
    """Largest divisor of n that is <= cap and a multiple of `multiple`.

    Falls back to n itself (full-extent blocks are always legal)."""
    best = None
    t = multiple
    while t <= min(cap, n):
        if n % t == 0:
            best = t
        t += multiple
    return best if best is not None else n


@functools.partial(jax.jit, static_argnames=("tm", "tk", "operand_dtype"))
def birth_death_dynamics(t, x, A, *, tm=None, tk=None, operand_dtype=None):
    """dx/dt = -B*x^b + A @ (R * x^a).  `t` is unused (autonomous system)."""
    del t
    N, D = x.shape
    assert A.shape == (N, N), f"A must be ({N},{N}), got {A.shape}"
    out_dtype = x.dtype

    # ---- operand prep (wrapper-side, once) --------------------------------
    # Fold R into A; bf16 A' by default (halves the dominant HBM stream).
    op_dtype = jnp.bfloat16 if operand_dtype is None else operand_dtype
    RA = (R_COEF * A.astype(jnp.float32)).astype(op_dtype)
    x_f32 = x.astype(jnp.float32)   # resident x: f32 epilogue stays exact

    # Lane-dense feature dim: pad D up to a multiple of 128 (layout plumbing,
    # padded columns compute exact zeros and are sliced off at the end).
    Dp = ((D + 127) // 128) * 128
    if Dp != D:
        x_f32 = jnp.pad(x_f32, ((0, 0), (0, Dp - D)))

    # ---- tiling -----------------------------------------------------------
    sub = _sublane_multiple(op_dtype)   # RA block is (tm, tk) in op_dtype
    if tm is None:
        cap = 512
        if N >= 2 * sub:
            cap = min(cap, N // 2)      # >= 2 row blocks -> megacore-friendly
        tm = _largest_tile(N, cap, sub)
    if tk is None:
        tk = _largest_tile(N, 2048, 128)
    assert N % tm == 0 and (tm % sub == 0 or tm == N), (
        f"tm={tm} must divide N={N} and be a multiple of {sub} for "
        f"{jnp.dtype(op_dtype).name} operands (or equal N)")
    assert N % tk == 0 and (tk % 128 == 0 or tk == N), (tk, N)

    grid = (N // tm, N // tk)

    # x resident in VMEM if it fits; otherwise stream it per block.
    x_bytes = N * Dp * 4
    use_resident = x_bytes <= _X_RESIDENT_MAX_BYTES

    ra_bytes = N * N * jnp.dtype(op_dtype).itemsize
    out_bytes = N * Dp * jnp.dtype(out_dtype).itemsize
    if use_resident:
        bytes_accessed = ra_bytes + x_bytes + out_bytes
    else:
        bytes_accessed = ra_bytes + (N // tm) * x_bytes + x_bytes + out_bytes
    cost = pl.CostEstimate(
        flops=2 * N * N * Dp + 3 * N * Dp,
        transcendentals=0,
        bytes_accessed=bytes_accessed,
    )

    compiler_params = pltpu.CompilerParams(
        dimension_semantics=("parallel", "arbitrary"),
        vmem_limit_bytes=_VMEM_LIMIT_BYTES,
    )

    if use_resident:
        out = pl.pallas_call(
            functools.partial(_bd_kernel_resident, tm=tm, tk=tk),
            out_shape=jax.ShapeDtypeStruct((N, Dp), out_dtype),
            grid_spec=pltpu.PrefetchScalarGridSpec(
                num_scalar_prefetch=0,
                grid=grid,
                in_specs=[
                    pl.BlockSpec((tm, tk), lambda i, k: (i, k)),  # A' tile
                    pl.BlockSpec((N, Dp), lambda i, k: (0, 0)),   # x resident
                ],
                out_specs=pl.BlockSpec((tm, Dp), lambda i, k: (i, 0)),
                scratch_shapes=[pltpu.VMEM((tm, Dp), jnp.float32)],
            ),
            compiler_params=compiler_params,
            cost_estimate=cost,
        )(RA, x_f32)
    else:
        out = pl.pallas_call(
            _bd_kernel_streamed,
            out_shape=jax.ShapeDtypeStruct((N, Dp), out_dtype),
            grid_spec=pltpu.PrefetchScalarGridSpec(
                num_scalar_prefetch=0,
                grid=grid,
                in_specs=[
                    pl.BlockSpec((tm, tk), lambda i, k: (i, k)),  # A' tile
                    pl.BlockSpec((tk, Dp), lambda i, k: (k, 0)),  # x k-block
                    pl.BlockSpec((tm, Dp), lambda i, k: (i, 0)),  # x rows
                ],
                out_specs=pl.BlockSpec((tm, Dp), lambda i, k: (i, 0)),
                scratch_shapes=[pltpu.VMEM((tm, Dp), jnp.float32)],
            ),
            compiler_params=compiler_params,
            cost_estimate=cost,
        )(RA, x_f32, x_f32)

    if Dp != D:
        out = out[:, :D]
    return out


if __name__ == "__main__":
    t = 0.0  # unused, autonomous system
    key = jax.random.PRNGKey(0)

    # Small shape consistent with the module (n nodes x dim features).
    N, D = 8, 32
    k_a, k_x = jax.random.split(key)
    A = jax.random.normal(k_a, (N, N), dtype=jnp.float32)
    x = jax.random.normal(k_x, (N, D), dtype=jnp.float32)

    out = jax.block_until_ready(
        birth_death_dynamics(t, x, A, operand_dtype=jnp.float32)
    )
    ref = -B_COEF * x ** B_POW + A @ (R_COEF * x ** A_POW)
    assert out.shape == (N, D) and out.dtype == x.dtype
    assert jnp.allclose(out, ref, atol=1e-5, rtol=1e-5)

    # Larger shape exercising the multi-step (row, K) grid + f32 accumulator,
    # full-precision operand path.
    N2, D2 = 256, 32
    k_a2, k_x2 = jax.random.split(jax.random.PRNGKey(0))
    A2 = jax.random.normal(k_a2, (N2, N2), dtype=jnp.float32)
    x2 = jax.random.normal(k_x2, (N2, D2), dtype=jnp.float32)
    out2 = jax.block_until_ready(
        birth_death_dynamics(t, x2, A2, tm=64, tk=128, operand_dtype=jnp.float32)
    )
    ref2 = -B_COEF * x2 ** B_POW + A2 @ (R_COEF * x2 ** A_POW)
    assert jnp.allclose(out2, ref2, atol=1e-4, rtol=1e-4)

    # Default path: bf16 A' operands, auto tiling (tm multiple of 16, >=2 row
    # blocks), f32 accumulation + f32 -B*x^2 epilogue -> loose tolerance vs
    # the f32 reference.
    out3 = jax.block_until_ready(birth_death_dynamics(t, x2, A2))
    assert out3.shape == (N2, D2) and out3.dtype == x2.dtype
    assert jnp.allclose(out3, ref2, atol=0.25, rtol=0.05)

    print("KERNEL_OK")
</pallas_src>

<mosaic_0001>
module attributes {stable_mosaic.version = 11 : i64} {
  func.func @_bd_kernel_resident(%arg0: i32, %arg1: i32, %arg2: memref<8x8xf32, #tpu.memory_space<vmem>>, %arg3: memref<8x128xf32, #tpu.memory_space<vmem>>, %arg4: memref<8x128xf32, #tpu.memory_space<vmem>>, %arg5: memref<8x128xf32, #tpu.memory_space<vmem>>) attributes {dimension_semantics = [#tpu.dimension_semantics<parallel>, #tpu.dimension_semantics<arbitrary>], iteration_bounds = array<i64: 1, 1>, scalar_prefetch = 0 : i64, scratch_operands = 1 : i64, tpu.core_type = #tpu.core_type<tc>, window_params = [{transform_indices = @transform_0, window_bounds = array<i64: 8, 8>}, {pipeline_mode = #tpu.pipeline_mode<synchronous>, transform_indices = @transform_1, window_bounds = array<i64: 8, 128>}, {transform_indices = @transform_2, window_bounds = array<i64: 8, 128>}]} {
    %c8_i32 = arith.constant 8 : i32
    %0 = arith.muli %arg1, %c8_i32 : i32
    %1 = tpu.assume_multiple %0, 8 : i32
    %2 = arith.index_cast %1 : i32 to index
    %c0 = arith.constant 0 : index
    %3 = vector.load %arg3[%2, %c0] : memref<8x128xf32, #tpu.memory_space<vmem>>, vector<8x128xf32>
    %c0_0 = arith.constant 0 : index
    %c0_1 = arith.constant 0 : index
    %4 = vector.load %arg2[%c0_0, %c0_1] : memref<8x8xf32, #tpu.memory_space<vmem>>, vector<8x8xf32>
    %cst = arith.constant dense<0.000000e+00> : vector<8x128xf32>
    %5 = tpu.matmul %4, %3, %cst {dimension_numbers = #tpu.dot_dimension_numbers<[1], [0], [0], [1], [0, 0, 1, 1], [], []>} : vector<8x8xf32>, vector<8x128xf32>, vector<8x128xf32> -> vector<8x128xf32>
    %c0_i32 = arith.constant 0 : i32
    %6 = arith.cmpi eq, %arg1, %c0_i32 : i32
    %7 = arith.extui %6 : i1 to i32
    %c0_i32_2 = arith.constant 0 : i32
    %8 = arith.cmpi ne, %7, %c0_i32_2 : i32
    scf.if %8 {
      %c0_7 = arith.constant 0 : index
      %c0_8 = arith.constant 0 : index
      %15 = vector.load %arg5[%c0_7, %c0_8] : memref<8x128xf32, #tpu.memory_space<vmem>>, vector<8x128xf32>
      tpu.vector_store %arg5[%c0_7, %c0_8], %5 {strides = array<i32>} : memref<8x128xf32, #tpu.memory_space<vmem>>, vector<8x128xf32>,
    } else {
    }
    %c0_i32_3 = arith.constant 0 : i32
    %9 = arith.cmpi ne, %arg1, %c0_i32_3 : i32
    %10 = arith.extui %9 : i1 to i32
    %c0_i32_4 = arith.constant 0 : i32
    %11 = arith.cmpi ne, %10, %c0_i32_4 : i32
    scf.if %11 {
      %c0_7 = arith.constant 0 : index
      %c0_8 = arith.constant 0 : index
      %15 = vector.load %arg5[%c0_7, %c0_8] : memref<8x128xf32, #tpu.memory_space<vmem>>, vector<8x128xf32>
      %16 = arith.addf %15, %5 : vector<8x128xf32>
      %c0_9 = arith.constant 0 : index
      %c0_10 = arith.constant 0 : index
      %17 = vector.load %arg5[%c0_9, %c0_10] : memref<8x128xf32, #tpu.memory_space<vmem>>, vector<8x128xf32>
      tpu.vector_store %arg5[%c0_9, %c0_10], %16 {strides = array<i32>} : memref<8x128xf32, #tpu.memory_space<vmem>>, vector<8x128xf32>,
    } else {
    }
    %c0_i32_5 = arith.constant 0 : i32
    %12 = arith.cmpi eq, %arg1, %c0_i32_5 : i32
    %13 = arith.extui %12 : i1 to i32
    %c0_i32_6 = arith.constant 0 : i32
    %14 = arith.cmpi ne, %13, %c0_i32_6 : i32
    scf.if %14 {
      %c8_i32_7 = arith.constant 8 : i32
      %15 = arith.muli %arg0, %c8_i32_7 : i32
      %16 = tpu.assume_multiple %15, 8 : i32
      %17 = arith.index_cast %16 : i32 to index
      %c0_8 = arith.constant 0 : index
      %18 = vector.load %arg3[%17, %c0_8] : memref<8x128xf32, #tpu.memory_space<vmem>>, vector<8x128xf32>
      %c0_9 = arith.constant 0 : index
      %c0_10 = arith.constant 0 : index
      %19 = vector.load %arg5[%c0_9, %c0_10] : memref<8x128xf32, #tpu.memory_space<vmem>>, vector<8x128xf32>
      %20 = arith.mulf %18, %18 : vector<8x128xf32>
      %cst_11 = arith.constant 1.000000e-01 : f32
      %21 = vector.broadcast %cst_11 : f32 to vector<8x128xf32>
      %22 = arith.mulf %21, %20 : vector<8x128xf32>
      %23 = arith.subf %19, %22 : vector<8x128xf32>
      %c0_12 = arith.constant 0 : index
      %c0_13 = arith.constant 0 : index
      %24 = vector.load %arg4[%c0_12, %c0_13] : memref<8x128xf32, #tpu.memory_space<vmem>>, vector<8x128xf32>
      tpu.vector_store %arg4[%c0_12, %c0_13], %23 {strides = array<i32>} : memref<8x128xf32, #tpu.memory_space<vmem>>, vector<8x128xf32>,
    } else {
    }
    return
  }
  func.func @transform_0(%arg0: i32, %arg1: i32) -> (i32, i32) {
    %c0_i32 = arith.constant 0 : i32
    return %arg0, %arg1 : i32, i32
  }
  func.func @transform_1(%arg0: i32, %arg1: i32) -> (i32, i32) {
    %c0_i32 = arith.constant 0 : i32
    %c0_i32_0 = arith.constant 0 : i32
    %c0_i32_1 = arith.constant 0 : i32
    return %c0_i32, %c0_i32_0 : i32, i32
  }
  func.func @transform_2(%arg0: i32, %arg1: i32) -> (i32, i32) {
    %c0_i32 = arith.constant 0 : i32
    %c0_i32_0 = arith.constant 0 : i32
    return %arg0, %c0_i32 : i32, i32
  }
}

</mosaic_0001>

<llo_original>
// kernel: birth_death_dynamics.1
$region0: #{birth_death_dynamics.1}
  #allocation0 [shape = 'u32[]', space=smem, size = 0x4, offset = 0x4, fixed_abs, tag = 'smem constant byte address 0x4 - core index']
  #allocation1 [shape = 'u32[144,128]{1,0:T(1,128)}', space=vmem, size = 0x12000, scoped, tag = 'internal scratch']
  #allocation2 [shape = 'f32[8,128]{1,0:T(8,128)}', space=vmem, size = 0x1000, scoped, tag = 'scratch operand']
  %s0 = inlined_call_operand.vmem [shape: f32[8,8], index: 0, kind: input, shape index: {}]
  %s1 = inlined_call_operand.vmem [shape: f32[8,128], index: 1, kind: input, shape index: {}]
  %s2 = inlined_call_operand.hbm [shape: f32[8,128], index: 2, kind: output, shape index: {}]
  %s3 = sld [smem:[#allocation0]]
  $region30: #{birth_death_dynamics.1} parent=0
    _
  %s5 = ssub.s32 1, %s3
  %s6 = scalar_select 0, %s5, %s3
  $region1: #{birth_death_dynamics.1} parent=0
    #allocation3 [shape = 'u8[4096]{0}', space=vmem, size = 0x1000, scoped, tag = 'output window, operand 0, single buffered']
    #allocation4 [shape = 's32[1]{0}', space=sflag, size = 0x4, scoped, tag = 'scoped memory for birth_death_dynamics.1']
    %7 = vsyncpa [#allocation4], 0
    // Predicated region
    $region2: #{birth_death_dynamics.1} parent=1 // pred_check
      _
    $region3: #{birth_death_dynamics.1} parent=1 // pred_check_branch
      %9 = sbr.rel (0) target = $region5
    $region4: #{birth_death_dynamics.1} parent=1 // pred_region
      _
    $region5: #{birth_death_dynamics.1} parent=1 // pred_fallthru
      _
    // Predicated region
    $region6: #{birth_death_dynamics.1} parent=1 // pred_check
      _
    $region7: #{birth_death_dynamics.1} parent=1 // pred_check_branch
      %11 = sbr.rel (0) target = $region9
    $region8: #{birth_death_dynamics.1} parent=1 // pred_region
      _
    $region9: #{birth_death_dynamics.1} parent=1 // pred_fallthru
      _
    %s12 = smul.u32 0, 8
    %s13 = scalar_lea.vmem %s1, %s12
    %v14 = vld [vmem:[%s13] sm:$0xff]
    %v15 = vld [vmem:[%s0] sm:$0xff]
    %vm16 = vcmask 64512
    %v18 = vsel %vm16, %v15, 0
    %20 = vmatprep.subr.mxu0 0.0
    %21 = vmatpush1.msra.mxu0 %v14
    %22 = vmatprep.subr.mxu0 0.0
    %23 = vmatpush1.msra.mxu0 0.0
    %24 = vmatprep.subr.mxu0 0.0
    %25 = vmatpush1.msra.mxu0 0.0
    %26 = vmatprep.subr.mxu0 0.0
    %27 = vmatpush1.msra.mxu0 0.0
    %28 = vmatprep.subr.mxu0 0.0
    %29 = vmatpush1.msra.mxu0 0.0
    %30 = vmatprep.subr.mxu0 0.0
    %31 = vmatpush1.msra.mxu0 0.0
    %32 = vmatprep.subr.mxu0 0.0
    %33 = vmatpush1.msra.mxu0 0.0
    %34 = vmatprep.subr.mxu0 0.0
    %35 = vmatpush1.msra.mxu0 0.0
    %36 = vmatprep.subr.mxu0 0.0
    %37 = vmatpush1.msra.mxu0 0.0
    %38 = vmatprep.subr.mxu0 0.0
    %39 = vmatpush1.msra.mxu0 0.0
    %40 = vmatprep.subr.mxu0 0.0
    %41 = vmatpush1.msra.mxu0 0.0
    %42 = vmatprep.subr.mxu0 0.0
    %43 = vmatpush1.msra.mxu0 0.0
    %44 = vmatprep.subr.mxu0 0.0
    %45 = vmatpush1.msra.mxu0 0.0
    %46 = vmatprep.subr.mxu0 0.0
    %47 = vmatpush1.msra.mxu0 0.0
    %48 = vmatprep.subr.mxu0 0.0
    %49 = vmatpush1.msra.mxu0 0.0
    %50 = vmatprep.subr.mxu0 0.0
    %51 = vmatpush1.msra.mxu0 0.0
    %52 = vmatprep.subr.mxu0 0.0
    %53 = vmatpush1.msra.mxu0 0.0
    %54 = vmatprep.subr.mxu0 0.0
    %55 = vmatpush1.msra.mxu0 0.0
    %56 = vmatprep.subr.mxu0 0.0
    %57 = vmatpush1.msra.mxu0 0.0
    %58 = vmatprep.subr.mxu0 0.0
    %59 = vmatpush1.msra.mxu0 0.0
    %60 = vmatprep.subr.mxu0 0.0
    %61 = vmatpush1.msra.mxu0 0.0
    %62 = vmatprep.subr.mxu0 0.0
    %63 = vmatpush1.msra.mxu0 0.0
    %64 = vmatprep.subr.mxu0 0.0
    %65 = vmatpush1.msra.mxu0 0.0
    %66 = vmatprep.subr.mxu0 0.0
    %67 = vmatpush1.msra.mxu0 0.0
    %68 = vmatprep.subr.mxu0 0.0
    %69 = vmatpush1.msra.mxu0 0.0
    %70 = vmatprep.subr.mxu0 0.0
    %71 = vmatpush1.msra.mxu0 0.0
    %72 = vmatprep.subr.mxu0 0.0
    %73 = vmatpush1.msra.mxu0 0.0
    %74 = vmatprep.subr.mxu0 0.0
    %75 = vmatpush1.msra.mxu0 0.0
    %76 = vmatprep.subr.mxu0 0.0
    %77 = vmatpush1.msra.mxu0 0.0
    %78 = vmatprep.subr.mxu0 0.0
    %79 = vmatpush1.msra.mxu0 0.0
    %80 = vmatprep.subr.mxu0 0.0
    %81 = vmatpush1.msra.mxu0 0.0
    %82 = vmatprep.subr.mxu0 0.0
    %83 = vmatpush1.msra.mxu0 0.0
    %84 = vmatprep.mubr.f32.mxu0 0.0
    %85 = vmatmul.mubr.f32.gmra.mrb[0].mxu0 %v18
    %v86 = vpop.f32.mrb[0].mxu0
    %v87 = vadd.f32 0.0, %v86
    %v88 = vpop.f32.mrb[0].mxu0
    %89 = vdwg.mxu0
    %p90 = scmp.eq.s32.totalorder 0, 0
    // Predicated region
    $region10: #{birth_death_dynamics.1} parent=1 // pred_check
      %p91 = pneg %p90
    $region11: #{birth_death_dynamics.1} parent=1 // pred_check_branch
      %93 = sbr.rel (%p91) target = $region13
    $region12: #{birth_death_dynamics.1} parent=1 // pred_region
      %94 = vst [vmem:[#allocation2] sm:$0xff] %v87
    $region13: #{birth_death_dynamics.1} parent=1 // pred_fallthru
      _
    %p95 = scmp.ne.s32.totalorder 0, 0
    // Predicated region
    $region14: #{birth_death_dynamics.1} parent=1 // pred_check
      %p96 = pneg %p95
    $region15: #{birth_death_dynamics.1} parent=1 // pred_check_branch
      %98 = sbr.rel (%p96) target = $region17
    $region16: #{birth_death_dynamics.1} parent=1 // pred_region
      %v99 = vld [vmem:[#allocation2] sm:$0xff]
      %v100 = vadd.f32 %v99, %v87
      %101 = vst [vmem:[#allocation2] sm:$0xff] %v100
    $region17: #{birth_death_dynamics.1} parent=1 // pred_fallthru
      _
    // Predicated region
    $region18: #{birth_death_dynamics.1} parent=1 // pred_check
      %p102 = pneg %p90
    $region19: #{birth_death_dynamics.1} parent=1 // pred_check_branch
      %104 = sbr.rel (%p102) target = $region21
    $region20: #{birth_death_dynamics.1} parent=1 // pred_region
      %s105 = smul.u32 0, 8
      %s106 = scalar_lea.vmem %s1, %s105
      %v107 = vld [vmem:[%s106] sm:$0xff]
      %v108 = vld [vmem:[#allocation2] sm:$0xff]
      %v109 = vmul.f32 %v107, %v107
      %v110 = vmul.f32 %v109, 0.1
      %v111 = vsub.f32 %v108, %v110
      %112 = vst [vmem:[#allocation3] sm:$0xff] %v111
    $region21: #{birth_death_dynamics.1} parent=1 // pred_fallthru
      _
    // Predicated region
    $region22: #{birth_death_dynamics.1} parent=1 // pred_check
      _
    $region23: #{birth_death_dynamics.1} parent=1 // pred_check_branch
      %114 = sbr.rel (0) target = $region25
    $region24: #{birth_death_dynamics.1} parent=1 // pred_region
      %s116 = ssub.s32 128, 128
      %117 = vsyncadd [#allocation4], %s116
      %s119 = sshll.u32 [#allocation3], 4
      %s120 = int_to_ptr.vmem [resolvable:$true] %s119
      %122 = dma.vmem_to_hbm [thread:$0]  %s120, 128, %s2, [#allocation4]
    $region25: #{birth_death_dynamics.1} parent=1 // pred_fallthru
      _
    // Predicated region
    $region26: #{birth_death_dynamics.1} parent=1 // pred_check
      _
    $region27: #{birth_death_dynamics.1} parent=1 // pred_check_branch
      %124 = sbr.rel (0) target = $region29
    $region28: #{birth_death_dynamics.1} parent=1 // pred_region
      %125 = dma.done [#allocation4], 128
    $region29: #{birth_death_dynamics.1} parent=1 // pred_fallthru
      _
    %126 = vsyncpa [#allocation4], 1

</llo_original>
